<compile_context>
chip_gen: v7x
topology: tpu7x:2x2x1
jax: 0.10.0
libtpu: 0.0.40
codegen_flags: <defaults>
</compile_context>

<pallas_src>
import jax
import jax.numpy as jnp
from jax.experimental import pallas as pl
from jax.experimental.pallas import tpu as pltpu


def _mca_gate_kernel(mix_ref, convT_ref, x_ref, o_ref):
    """One (bt, C, HW) batch tile per grid step.

    mix_ref   : SMEM (2,) f32   -- (0.5 + sigmoid(w0), 0.5 + sigmoid(w1))
    convT_ref : VMEM (C, C) f32 -- transposed banded Conv2d(1,1,(1,k)) matrix
    x_ref     : VMEM (bt, C, HW)   native dtype
    o_ref     : VMEM (bt, C, HW)   native dtype
    """
    hw = x_ref.shape[-1]
    inv_hw = 1.0 / float(hw)
    # HW==1 guard: torch std(ddof=1) would be NaN for a single element; we
    # intentionally return std=0 there instead (documented divergence).
    inv_hw_m1 = 1.0 / float(max(hw - 1, 1))

    x = x_ref[...]                                     # (bt, C, HW) native dtype
    xf = x.astype(jnp.float32)                         # f32 only for statistics

    # Two-pass mean/var (numerically safer than E[x^2]-E[x]^2 for f32 atol=1e-5).
    mean = jnp.sum(xf, axis=-1) * inv_hw                               # (bt, C)
    var = jnp.sum(jnp.square(xf - mean[..., None]), axis=-1) * inv_hw_m1
    std = jnp.sqrt(var)                                                # (bt, C)

    # Lane-dense pooled/gate: C on the lane axis for the whole mix/conv/sigmoid stage.
    pooled = mix_ref[0] * mean + mix_ref[1] * std                      # (bt, C)
    gate = jnp.dot(pooled, convT_ref[...], preferred_element_type=jnp.float32)
    gate = jax.nn.sigmoid(gate)                                        # (bt, C)

    # Gate-apply in native dtype (bf16 VALU on v6e/v7x); broadcast over HW.
    o_ref[...] = (x * gate[..., None].astype(x.dtype)).astype(o_ref.dtype)


def _tpu_vmem_and_cores():
    """Best-effort hardware query; conservative fallbacks if unavailable."""
    vmem_cap = 64 * 1024 * 1024          # v7x physical VMEM (smallest of the fleet)
    n_tc = 1                             # v5e/v6e have 1 TensorCore per chip
    try:
        info = pltpu.get_tpu_info()
        vmem_cap = int(getattr(info, "vmem_capacity_bytes", vmem_cap))
        for attr in ("num_cores", "core_count", "num_tensorcores", "tensorcore_count"):
            v = getattr(info, attr, None)
            if v:
                n_tc = int(v)
                break
    except Exception:
        pass
    return vmem_cap, n_tc


def mca_gate(x_nchw, conv_w, mix_w, *, k_size):
    """Pallas implementation of MCAGate.forward (pool_types=['avg','std'])."""
    B, C, H, W = x_nchw.shape
    HW = H * W
    dtype = x_nchw.dtype
    x = x_nchw.reshape(B, C, HW)                       # native dtype for HBM<->VMEM
    # TODO(synk): for HW that is not a multiple of 128, pad HW to a lane multiple
    # to avoid masked vst partial stores (not needed for the shapes exercised here).

    # ---- grid-invariant parameter glue (hoisted out of the kernel) ----
    taps = conv_w.reshape(-1).astype(jnp.float32)      # (k,)
    pad = (k_size - 1) // 2
    ri = jax.lax.broadcasted_iota(jnp.int32, (C, C), 0)   # input-channel index j
    ci = jax.lax.broadcasted_iota(jnp.int32, (C, C), 1)   # output-channel index o
    # Transposed banded matrix: convT[j, o] = taps[j - o + pad] (0 outside band),
    # so gate[b, o] = sum_j pooled[b, j] * convT[j, o] == zero-padded k-tap conv.
    convT = jnp.zeros((C, C), jnp.float32)
    for i in range(k_size):
        convT = convT + jnp.where(ri - ci == (i - pad), taps[i], 0.0)
    w = jax.nn.sigmoid(mix_w.astype(jnp.float32))
    mix = jnp.stack([0.5 + w[0], 0.5 + w[1]])          # pooled = mix0*mean + mix1*std

    # ---- batch-tile size from a generation-aware VMEM budget ----
    vmem_cap, n_tc = _tpu_vmem_and_cores()
    vmem_budget = max(8 * 1024 * 1024,
                      min(int(0.60 * vmem_cap), 48 * 1024 * 1024))  # ~38 MiB on v7x, 48 MiB on v5e/v6e
    itemsize = jnp.dtype(dtype).itemsize
    # Per batch element: double-buffered in + out (native) + ~3 f32 compiler temps
    # (xf, centered, squared) for the statistics pass.
    per_b = 4 * C * HW * itemsize + 3 * C * HW * 4
    fixed = 2 * C * C * 4 + (2 << 20)                  # double-buffered convT + slack
    bt = max(1, min(B, (vmem_budget - fixed) // per_b))
    if n_tc > 1 and B >= n_tc:
        bt = min(bt, max(1, B // n_tc))                # keep >= n_tc grid steps (v7x only)
    bt = int(bt)
    num_steps = (B + bt - 1) // bt                     # ceil-div grid; last tile may be ragged

    cp_kwargs = dict(dimension_semantics=("parallel",))
    vmem_needed = fixed + bt * per_b
    if vmem_needed > 12 * 1024 * 1024:
        # Raise the scoped VMEM limit, staying within the generation-aware budget.
        # TODO(synk): for single images with very large C*HW, switch to an HW-tiled
        # two-pass structure (pass 1: sum/sumsq per tile; pass 2: apply the gate).
        cp_kwargs["vmem_limit_bytes"] = int(
            min(max(vmem_needed, vmem_budget), int(0.85 * vmem_cap)))

    out = pl.pallas_call(
        _mca_gate_kernel,
        out_shape=jax.ShapeDtypeStruct((B, C, HW), dtype),
        grid=(num_steps,),
        in_specs=[
            pl.BlockSpec(memory_space=pltpu.MemorySpace.SMEM),   # mixing scalars (2,)
            pl.BlockSpec((C, C), lambda b: (0, 0)),              # convT, constant index_map
            pl.BlockSpec((bt, C, HW), lambda b: (b, 0, 0)),      # x batch tile
        ],
        out_specs=pl.BlockSpec((bt, C, HW), lambda b: (b, 0, 0)),
        compiler_params=pltpu.CompilerParams(**cp_kwargs),
    )(mix, convT, x)
    return out.reshape(B, C, H, W)


def _reference(x, conv_w, mix_w, k_size):
    """Pure-JAX re-statement of the PyTorch forward for validation."""
    B, C, H, W = x.shape
    xf = x.reshape(B, C, -1)
    mean = xf.mean(axis=-1)                       # AdaptiveAvgPool2d(1)
    std = jnp.std(xf, axis=-1, ddof=1)            # StdPool (torch unbiased std)
    w = jax.nn.sigmoid(mix_w)
    out = 0.5 * (mean + std) + w[0] * mean + w[1] * std      # (B, C)
    pad = (k_size - 1) // 2
    padded = jnp.pad(out, ((0, 0), (pad, pad)))
    taps = conv_w.reshape(-1)
    gate = jnp.stack(
        [jnp.sum(padded[:, c:c + k_size] * taps, axis=-1) for c in range(C)],
        axis=-1,
    )
    gate = jax.nn.sigmoid(gate)                   # (B, C)
    return x * gate[:, :, None, None]


if __name__ == "__main__":
    key = jax.random.PRNGKey(0)
    kx, kw, km = jax.random.split(key, 3)

    B, C, H, W = 2, 8, 16, 16
    k_size = 3

    x = jax.random.normal(kx, (B, C, H, W), dtype=jnp.float32)
    # deterministic synthetic parameters (shapes from MCAGate.__init__)
    conv_w = 0.1 * jax.random.normal(kw, (1, 1, 1, k_size), dtype=jnp.float32)
    mix_w = jax.random.uniform(km, (2,), dtype=jnp.float32)      # torch.rand(2)

    # float32 path
    y = mca_gate(x, conv_w, mix_w, k_size=k_size)
    jax.block_until_ready(y)
    y_ref = _reference(x, conv_w, mix_w, k_size)
    assert y.shape == x.shape and y.dtype == x.dtype
    assert jnp.allclose(y, y_ref, atol=1e-5, rtol=1e-5), "f32 mismatch vs reference"

    # bf16 path: native-dtype HBM I/O and native-dtype gate apply, f32 statistics
    x_bf = x.astype(jnp.bfloat16)
    y_bf = mca_gate(x_bf, conv_w, mix_w, k_size=k_size)
    jax.block_until_ready(y_bf)
    y_bf_ref = _reference(x_bf.astype(jnp.float32), conv_w, mix_w, k_size)
    assert y_bf.dtype == jnp.bfloat16
    assert jnp.allclose(y_bf.astype(jnp.float32), y_bf_ref, atol=2e-2, rtol=2e-2), \
        "bf16 mismatch vs reference"

    print("KERNEL_OK")
</pallas_src>

<mosaic_0001>
module attributes {stable_mosaic.version = 11 : i64} {
  func.func @_mca_gate_kernel(%arg0: i32, %arg1: memref<2xf32, #tpu.memory_space<smem>>, %arg2: memref<8x8xf32, #tpu.memory_space<vmem>>, %arg3: memref<2x8x256xf32, #tpu.memory_space<vmem>>, %arg4: memref<2x8x256xf32, #tpu.memory_space<vmem>>) attributes {dimension_semantics = [#tpu.dimension_semantics<parallel>], iteration_bounds = array<i64: 1>, scalar_prefetch = 0 : i64, scratch_operands = 0 : i64, tpu.core_type = #tpu.core_type<tc>, window_params = [{transform_indices = @transform_0, window_bounds = array<i64: 2>}, {pipeline_mode = #tpu.pipeline_mode<synchronous>, transform_indices = @transform_1, window_bounds = array<i64: 8, 8>}, {transform_indices = @transform_2, window_bounds = array<i64: 2, 8, 256>}, {transform_indices = @transform_3, window_bounds = array<i64: 2, 8, 256>}]} {
    %c0 = arith.constant 0 : index
    %c0_0 = arith.constant 0 : index
    %c0_1 = arith.constant 0 : index
    %0 = vector.load %arg3[%c0, %c0_0, %c0_1] : memref<2x8x256xf32, #tpu.memory_space<vmem>>, vector<2x8x256xf32>
    %cst = arith.constant dense<0.000000e+00> : vector<2x8xf32>
    %1 = vector.multi_reduction <add>, %0, %cst [2] : vector<2x8x256xf32> to vector<2x8xf32>
    %cst_2 = arith.constant 3.906250e-03 : f32
    %2 = vector.broadcast %cst_2 : f32 to vector<2x8xf32>
    %3 = arith.mulf %1, %2 : vector<2x8xf32>
    %4 = vector.shape_cast %3 : vector<2x8xf32> to vector<2x8x1xf32>
    %5 = vector.broadcast %4 : vector<2x8x1xf32> to vector<2x8x256xf32>
    %6 = arith.subf %0, %5 : vector<2x8x256xf32>
    %7 = arith.mulf %6, %6 : vector<2x8x256xf32>
    %cst_3 = arith.constant dense<0.000000e+00> : vector<2x8xf32>
    %8 = vector.multi_reduction <add>, %7, %cst_3 [2] : vector<2x8x256xf32> to vector<2x8xf32>
    %cst_4 = arith.constant 0.00392156886 : f32
    %9 = vector.broadcast %cst_4 : f32 to vector<2x8xf32>
    %10 = arith.mulf %8, %9 : vector<2x8xf32>
    %11 = math.sqrt %10 : vector<2x8xf32>
    %c0_5 = arith.constant 0 : index
    %12 = memref.load %arg1[%c0_5] : memref<2xf32, #tpu.memory_space<smem>>
    %13 = vector.broadcast %12 : f32 to vector<2x8xf32>
    %14 = arith.mulf %13, %3 : vector<2x8xf32>
    %c1 = arith.constant 1 : index
    %15 = memref.load %arg1[%c1] : memref<2xf32, #tpu.memory_space<smem>>
    %16 = vector.broadcast %15 : f32 to vector<2x8xf32>
    %17 = arith.mulf %16, %11 : vector<2x8xf32>
    %18 = arith.addf %14, %17 : vector<2x8xf32>
    %c0_6 = arith.constant 0 : index
    %c0_7 = arith.constant 0 : index
    %19 = vector.load %arg2[%c0_6, %c0_7] : memref<8x8xf32, #tpu.memory_space<vmem>>, vector<8x8xf32>
    %cst_8 = arith.constant dense<0.000000e+00> : vector<2x8xf32>
    %20 = tpu.matmul %18, %19, %cst_8 {dimension_numbers = #tpu.dot_dimension_numbers<[1], [0], [0], [1], [0, 0, 1, 1], [], []>} : vector<2x8xf32>, vector<8x8xf32>, vector<2x8xf32> -> vector<2x8xf32>
    %21 = arith.negf %20 : vector<2x8xf32>
    %22 = math.exp %21 : vector<2x8xf32>
    %cst_9 = arith.constant 1.000000e+00 : f32
    %23 = vector.broadcast %cst_9 : f32 to vector<2x8xf32>
    %24 = arith.addf %23, %22 : vector<2x8xf32>
    %25 = arith.divf %23, %24 : vector<2x8xf32>
    %26 = vector.shape_cast %25 : vector<2x8xf32> to vector<2x8x1xf32>
    %27 = vector.broadcast %26 : vector<2x8x1xf32> to vector<2x8x256xf32>
    %28 = arith.mulf %0, %27 : vector<2x8x256xf32>
    %c0_10 = arith.constant 0 : index
    %c0_11 = arith.constant 0 : index
    %c0_12 = arith.constant 0 : index
    %29 = vector.load %arg4[%c0_10, %c0_11, %c0_12] : memref<2x8x256xf32, #tpu.memory_space<vmem>>, vector<2x8x256xf32>
    tpu.vector_store %arg4[%c0_10, %c0_11, %c0_12], %28 {strides = array<i32>} : memref<2x8x256xf32, #tpu.memory_space<vmem>>, vector<2x8x256xf32>,
    return
  }
  func.func @transform_0(%arg0: i32) -> i32 {
    %c0_i32 = arith.constant 0 : i32
    %c0_i32_0 = arith.constant 0 : i32
    return %c0_i32 : i32
  }
  func.func @transform_1(%arg0: i32) -> (i32, i32) {
    %c0_i32 = arith.constant 0 : i32
    %c0_i32_0 = arith.constant 0 : i32
    %c0_i32_1 = arith.constant 0 : i32
    return %c0_i32, %c0_i32_0 : i32, i32
  }
  func.func @transform_2(%arg0: i32) -> (i32, i32, i32) {
    %c0_i32 = arith.constant 0 : i32
    %c0_i32_0 = arith.constant 0 : i32
    %c0_i32_1 = arith.constant 0 : i32
    return %arg0, %c0_i32, %c0_i32_0 : i32, i32, i32
  }
  func.func @transform_3(%arg0: i32) -> (i32, i32, i32) {
    %c0_i32 = arith.constant 0 : i32
    %c0_i32_0 = arith.constant 0 : i32
    %c0_i32_1 = arith.constant 0 : i32
    return %arg0, %c0_i32, %c0_i32_0 : i32, i32, i32
  }
}

</mosaic_0001>

<llo_original>
// kernel: tpu_custom_call.1
$region0: #{tpu_custom_call.1}
  #allocation0 [shape = 'u32[]', space=smem, size = 0x4, offset = 0x4, fixed_abs, tag = 'smem constant byte address 0x4 - core index']
  #allocation1 [shape = 'u32[144,128]{1,0:T(1,128)}', space=vmem, size = 0x12000, scoped, tag = 'internal scratch']
  %s0 = inlined_call_operand.hbm [shape: f32[2], index: 0, kind: input, shape index: {}]
  %s1 = inlined_call_operand.hbm [shape: f32[8,8], index: 1, kind: input, shape index: {}]
  %s2 = inlined_call_operand.hbm [shape: f32[2,8,256], index: 2, kind: input, shape index: {}]
  %s3 = inlined_call_operand.hbm [shape: f32[2,8,256], index: 3, kind: output, shape index: {}]
  %s4 = sld [smem:[#allocation0]]
  $region34: #{tpu_custom_call.1} parent=0
    _
  %s6 = ssub.s32 1, %s4
  %s7 = scalar_select 0, %s6, %s4
  $region1: #{tpu_custom_call.1} parent=0
    #allocation2 [shape = 'u8[512]{0}', space=smem, size = 0x200, scoped, tag = 'input window, operand 0, single buffered']
    #allocation3 [shape = 's32[1]{0}', space=sflag, size = 0x4, scoped, tag = 'scoped memory for tpu_custom_call.1']
    #allocation4 [shape = 's32[1]{0}', space=sflag, size = 0x4, scoped, tag = 'scoped memory for tpu_custom_call.1']
    #allocation5 [shape = 's32[1]{0}', space=sflag, size = 0x4, scoped, tag = 'scoped memory for tpu_custom_call.1']
    #allocation6 [shape = 'u8[4096]{0}', space=vmem, size = 0x1000, scoped, tag = 'input window, operand 1, single buffered']
    #allocation7 [shape = 'u8[16384]{0}', space=vmem, size = 0x4000, scoped, tag = 'input window, operand 2, single buffered']
    #allocation8 [shape = 's32[1]{0}', space=sflag, size = 0x4, scoped, tag = 'scoped memory for tpu_custom_call.1']
    #allocation9 [shape = 'u8[16384]{0}', space=vmem, size = 0x4000, scoped, tag = 'output window, operand 0, single buffered']
    %8 = vsyncpa [#allocation5], 0
    %9 = vsyncpa [#allocation3], 0
    %10 = vsyncpa [#allocation8], 0
    %11 = vsyncpa [#allocation4], 0
    // Predicated region
    $region2: #{tpu_custom_call.1} parent=1 // pred_check
      _
    $region3: #{tpu_custom_call.1} parent=1 // pred_check_branch
      %13 = sbr.rel (0) target = $region5
    $region4: #{tpu_custom_call.1} parent=1 // pred_region
      %s15 = ssub.s32 16, 16
      %16 = vsyncadd [#allocation5], %s15
      %19 = dma.hbm_to_smem %s0, 16, [#allocation2], [#allocation5]
    $region5: #{tpu_custom_call.1} parent=1 // pred_fallthru
      _
    // Predicated region
    $region6: #{tpu_custom_call.1} parent=1 // pred_check
      _
    $region7: #{tpu_custom_call.1} parent=1 // pred_check_branch
      %21 = sbr.rel (0) target = $region9
    $region8: #{tpu_custom_call.1} parent=1 // pred_region
      %s23 = ssub.s32 128, 128
      %24 = vsyncadd [#allocation3], %s23
      %s26 = sshll.u32 [#allocation6], 4
      %s27 = int_to_ptr.vmem [resolvable:$true] %s26
      %29 = dma.hbm_to_vmem [thread:$0]  %s1, 128, %s27, [#allocation3]
    $region9: #{tpu_custom_call.1} parent=1 // pred_fallthru
      _
    // Predicated region
    $region10: #{tpu_custom_call.1} parent=1 // pred_check
      _
    $region11: #{tpu_custom_call.1} parent=1 // pred_check_branch
      %31 = sbr.rel (0) target = $region13
    $region12: #{tpu_custom_call.1} parent=1 // pred_region
      %s33 = ssub.s32 512, 512
      %34 = vsyncadd [#allocation8], %s33
      %s35 = sshll.u32 [#allocation7], 4
      %s36 = int_to_ptr.vmem [resolvable:$true] %s35
      %41 = dma.hbm_to_vmem [thread:$0]  %s2, 512, %s36, [#allocation8], 256, 256, 16
    $region13: #{tpu_custom_call.1} parent=1 // pred_fallthru
      _
    // Predicated region
    $region14: #{tpu_custom_call.1} parent=1 // pred_check
      _
    $region15: #{tpu_custom_call.1} parent=1 // pred_check_branch
      %43 = sbr.rel (0) target = $region17
    $region16: #{tpu_custom_call.1} parent=1 // pred_region
      %44 = dma.done [#allocation5], 16
    $region17: #{tpu_custom_call.1} parent=1 // pred_fallthru
      _
    // Predicated region
    $region18: #{tpu_custom_call.1} parent=1 // pred_check
      _
    $region19: #{tpu_custom_call.1} parent=1 // pred_check_branch
      %46 = sbr.rel (0) target = $region21
    $region20: #{tpu_custom_call.1} parent=1 // pred_region
      %47 = dma.done [#allocation3], 128
    $region21: #{tpu_custom_call.1} parent=1 // pred_fallthru
      _
    // Predicated region
    $region22: #{tpu_custom_call.1} parent=1 // pred_check
      _
    $region23: #{tpu_custom_call.1} parent=1 // pred_check_branch
      %49 = sbr.rel (0) target = $region25
    $region24: #{tpu_custom_call.1} parent=1 // pred_region
      %50 = dma.done [#allocation8], 512
    $region25: #{tpu_custom_call.1} parent=1 // pred_fallthru
      _
    %51 = sfence
    %v52 = vld [vmem:[#allocation7] sm:$0xff]
    %v53 = vld [vmem:[#allocation7 + $0x8] sm:$0xff]
    %v54 = vld [vmem:[#allocation7 + $0x10] sm:$0xff]
    %v55 = vld [vmem:[#allocation7 + $0x18] sm:$0xff]
    %v56 = vadd.f32 %v52, %v53
    %57 = vadd.xlane.f32.xlu0 %v56
    %v58 = vpop.xlane.xlu0 %57
    %v59 = vadd.f32 %v54, %v55
    %60 = vadd.xlane.f32.xlu0 %v59
    %v61 = vpop.xlane.xlu0 %60
    %v62 = vmul.f32 %v58, 0.00390625
    %v63 = vmul.f32 %v61, 0.00390625
    %v64 = vsub.f32 %v52, %v62
    %v65 = vsub.f32 %v53, %v62
    %v66 = vsub.f32 %v54, %v63
    %v67 = vsub.f32 %v55, %v63
    %v68 = vmul.f32 %v64, %v64
    %v69 = vmul.f32 %v65, %v65
    %v70 = vmul.f32 %v66, %v66
    %v71 = vmul.f32 %v67, %v67
    %v72 = vadd.f32 %v68, %v69
    %73 = vadd.xlane.f32.xlu0 %v72
    %v74 = vpop.xlane.xlu0 %73
    %v75 = vadd.f32 %v70, %v71
    %76 = vadd.xlane.f32.xlu0 %v75
    %v77 = vpop.xlane.xlu0 %76
    %v78 = vmul.f32 %v74, 0.003921569
    %v79 = vmul.f32 %v77, 0.003921569
    %v80 = vrsqrt.pop %v78
    %v81 = vmul.f32 %v78, %v80
    %vm82 = vcmp.eq.f32.partialorder %v78, inf
    %v83 = vsel %vm82, %v78, %v81
    %vm84 = vcmp.eq.f32.partialorder %v78, 0.0
    %v85 = vand.u32 %v78, 2147483648
    %v86 = vsel %vm84, %v85, %v83
    %v87 = vrsqrt.pop %v79
    %v88 = vmul.f32 %v79, %v87
    %vm89 = vcmp.eq.f32.partialorder %v79, inf
    %v90 = vsel %vm89, %v79, %v88
    %vm91 = vcmp.eq.f32.partialorder %v79, 0.0
    %v92 = vand.u32 %v79, 2147483648
    %v93 = vsel %vm91, %v92, %v90
    %s94 = sld [smem:[#allocation2]]
    %v95 = vstv %s94
    %v96 = vmul.f32 %v95, %v62
    %v97 = vmul.f32 %v95, %v63
    %s98 = sld [smem:[#allocation2 + $0x1]]
    %v99 = vstv %s98
    %v100 = vmul.f32 %v99, %v86
    %v101 = vmul.f32 %v99, %v93
    %v102 = vadd.f32 %v96, %v100
    %v103 = vadd.f32 %v97, %v101
    %v104 = vld [vmem:[#allocation6] sm:$0xff]
    %v107 = vlaneseq
    %v108 = vand.u32 %v107, 127
    %v109 = vlaneseq
    %v110 = vshrl.u32 %v109, 7
    %v111 = vsub.s32 %v108, %v110
    %v112 = vrot.slane %v102, %v111
    %v113 = vlaneseq
    %v114 = vshrl.u32 %v113, 7
    %v115 = vsub.s32 %v108, %v114
    %v116 = vrot.slane %v103, %v115
    %vm117 = vcmask 1041409
    %v118 = vsel %vm117, %v116, %v112
    %vm119 = vcmask 64512
    %v120 = vsel %vm119, %v118, 0
    %122 = vmatprep.subr.mxu0 0.0
    %123 = vmatpush1.msra.mxu0 %v104
    %124 = vmatprep.subr.mxu0 0.0
    %125 = vmatpush1.msra.mxu0 0.0
    %126 = vmatprep.subr.mxu0 0.0
    %127 = vmatpush1.msra.mxu0 0.0
    %128 = vmatprep.subr.mxu0 0.0
    %129 = vmatpush1.msra.mxu0 0.0
    %130 = vmatprep.subr.mxu0 0.0
    %131 = vmatpush1.msra.mxu0 0.0
    %132 = vmatprep.subr.mxu0 0.0
    %133 = vmatpush1.msra.mxu0 0.0
    %134 = vmatprep.subr.mxu0 0.0
    %135 = vmatpush1.msra.mxu0 0.0
    %136 = vmatprep.subr.mxu0 0.0
    %137 = vmatpush1.msra.mxu0 0.0
    %138 = vmatprep.subr.mxu0 0.0
    %139 = vmatpush1.msra.mxu0 0.0
    %140 = vmatprep.subr.mxu0 0.0
    %141 = vmatpush1.msra.mxu0 0.0
    %142 = vmatprep.subr.mxu0 0.0
    %143 = vmatpush1.msra.mxu0 0.0
    %144 = vmatprep.subr.mxu0 0.0
    %145 = vmatpush1.msra.mxu0 0.0
    %146 = vmatprep.subr.mxu0 0.0
    %147 = vmatpush1.msra.mxu0 0.0
    %148 = vmatprep.subr.mxu0 0.0
    %149 = vmatpush1.msra.mxu0 0.0
    %150 = vmatprep.subr.mxu0 0.0
    %151 = vmatpush1.msra.mxu0 0.0
    %152 = vmatprep.subr.mxu0 0.0
    %153 = vmatpush1.msra.mxu0 0.0
    %154 = vmatprep.subr.mxu0 0.0
    %155 = vmatpush1.msra.mxu0 0.0
    %156 = vmatprep.subr.mxu0 0.0
    %157 = vmatpush1.msra.mxu0 0.0
    %158 = vmatprep.subr.mxu0 0.0
    %159 = vmatpush1.msra.mxu0 0.0
    %160 = vmatprep.subr.mxu0 0.0
    %161 = vmatpush1.msra.mxu0 0.0
    %162 = vmatprep.subr.mxu0 0.0
    %163 = vmatpush1.msra.mxu0 0.0
    %164 = vmatprep.subr.mxu0 0.0
    %165 = vmatpush1.msra.mxu0 0.0
    %166 = vmatprep.subr.mxu0 0.0
    %167 = vmatpush1.msra.mxu0 0.0
    %168 = vmatprep.subr.mxu0 0.0
    %169 = vmatpush1.msra.mxu0 0.0
    %170 = vmatprep.subr.mxu0 0.0
    %171 = vmatpush1.msra.mxu0 0.0
    %172 = vmatprep.subr.mxu0 0.0
    %173 = vmatpush1.msra.mxu0 0.0
    %174 = vmatprep.subr.mxu0 0.0
    %175 = vmatpush1.msra.mxu0 0.0
    %176 = vmatprep.subr.mxu0 0.0
    %177 = vmatpush1.msra.mxu0 0.0
    %178 = vmatprep.subr.mxu0 0.0
    %179 = vmatpush1.msra.mxu0 0.0
    %180 = vmatprep.subr.mxu0 0.0
    %181 = vmatpush1.msra.mxu0 0.0
    %182 = vmatprep.subr.mxu0 0.0
    %183 = vmatpush1.msra.mxu0 0.0
    %184 = vmatprep.subr.mxu0 0.0
    %185 = vmatpush1.msra.mxu0 0.0
    %186 = vmatprep.mubr.f32.mxu0 0.0
    %187 = vmatmul.mubr.f32.gmra.mrb[0].mxu0 %v120
    %v188 = vpop.f32.mrb[0].mxu0
    %v189 = vadd.f32 0.0, %v188
    %v190 = vpop.f32.mrb[0].mxu0
    %191 = vdwg.mxu0
    %v192 = vxor.u32 %v189, 2147483648
    %v193 = vmul.f32 %v192, 1.442695
    %v194 = vpow.pop %v193
    %v195 = vadd.f32 %v194, 1.0
    %v196 = vrcp.pop %v195
    %v197 = vmul.f32 1.0, %v196
    %v198 = vlaneseq
    %v199 = vshrl.u32 %v198, 7
    %v200 = vsub.s32 0, %v199
    %v201 = vrot.slane %v197, %v200
    %203 = vbcast.lane.b32.xlu0 %v201, 256
    %v204 = vpop.permute.xlu0 %203
    %v205 = vlaneseq
    %v206 = vshrl.u32 %v205, 7
    %v207 = vsub.s32 1, %v206
    %v208 = vrot.slane %v197, %v207
    %210 = vbcast.lane.b32.xlu0 %v208, 256
    %v211 = vpop.permute.xlu0 %210
    %v212 = vmul.f32 %v52, %v204
    %v213 = vmul.f32 %v53, %v204
    %v214 = vmul.f32 %v54, %v211
    %v215 = vmul.f32 %v55, %v211
    %216 = vst [vmem:[#allocation9] sm:$0xff] %v212
    %217 = vst [vmem:[#allocation9 + $0x8] sm:$0xff] %v213
    %218 = vst [vmem:[#allocation9 + $0x10] sm:$0xff] %v214
    %219 = vst [vmem:[#allocation9 + $0x18] sm:$0xff] %v215
    // Predicated region
    $region26: #{tpu_custom_call.1} parent=1 // pred_check
      _
    $region27: #{tpu_custom_call.1} parent=1 // pred_check_branch
      %221 = sbr.rel (0) target = $region29
    $region28: #{tpu_custom_call.1} parent=1 // pred_region
      %s223 = ssub.s32 512, 512
      %224 = vsyncadd [#allocation4], %s223
      %s225 = sshll.u32 [#allocation9], 4
      %s226 = int_to_ptr.vmem [resolvable:$true] %s225
      %231 = dma.vmem_to_hbm [thread:$0]  %s226, 512, %s3, [#allocation4], 256, 256, 16
    $region29: #{tpu_custom_call.1} parent=1 // pred_fallthru
      _
    // Predicated region
    $region30: #{tpu_custom_call.1} parent=1 // pred_check
      _
    $region31: #{tpu_custom_call.1} parent=1 // pred_check_branch
      %233 = sbr.rel (0) target = $region33
    $region32: #{tpu_custom_call.1} parent=1 // pred_region
      %234 = dma.done [#allocation4], 512
    $region33: #{tpu_custom_call.1} parent=1 // pred_fallthru
      _
    %235 = vsyncpa [#allocation3], 1
    %236 = vsyncpa [#allocation8], 1
    %237 = vsyncpa [#allocation4], 1
    %238 = vsyncpa [#allocation5], 1

</llo_original>
